<compile_context>
chip_gen: v6e
topology: v6e:2x2x1
jax: 0.10.0
libtpu: 0.0.40
codegen_flags: <defaults>
</compile_context>

<pallas_src>
import jax
import jax.numpy as jnp
from jax.experimental import pallas as pl
from jax.experimental.pallas import tpu as pltpu


_LANE = 128            # vreg lane width
_SUB = 8               # f32 vreg sublane count
_W_ROWS = _LANE        # padded weight rows per layer (all in-dims <= 128 here)
_BLK_ROWS = _W_ROWS + _SUB   # 136: weight block + one 8-row region holding the bias


def _make_autoencoder_kernel(n_enc_layers: int, n_dec_layers: int):
    """Kernel closure over static layer counts.

    Refs: x (bt,128), params (n_layers,136,128), control_out (bt,128),
    state_out (bt,128).  All activations stay as full (bt,128) f32 tiles.
    """
    n_total = n_enc_layers + n_dec_layers

    def kernel(x_ref, p_ref, control_ref, state_ref):
        h = x_ref[...]                                        # (bt, 128)
        for li in range(n_total):                             # statically unrolled
            w = p_ref[li, 0:_W_ROWS, :]                       # (128, 128) static slice
            b = p_ref[li, _W_ROWS:_W_ROWS + 1, :]             # (1, 128) bias row
            h = jnp.dot(h, w, preferred_element_type=jnp.float32) + b
            if li == n_enc_layers - 1:
                # TODO(synk): rb_to_ratio() source is not provided with the
                # reference module; approximated as a sigmoid mapping to (0,1).
                h = jax.nn.sigmoid(h)
                control_ref[...] = h                          # full-vreg unmasked store
            elif li < n_total - 1:
                h = jnp.maximum(h, 0.0)                       # ReLU between hidden layers
        state_ref[...] = h                                    # full-vreg unmasked store

    return kernel


def _pack_params(layer_params):
    """Pack [(W_t(in,out), b(out,)), ...] into one zero-padded (L,136,128) slab."""
    n = len(layer_params)
    slab = jnp.zeros((n, _BLK_ROWS, _LANE), jnp.float32)
    for li, (w, b) in enumerate(layer_params):
        fi, fo = w.shape
        assert fi <= _W_ROWS and fo <= _LANE, "layer dims exceed single-vreg padding"
        slab = slab.at[li, :fi, :fo].set(w.astype(jnp.float32))
        slab = slab.at[li, _W_ROWS, :fo].set(b.astype(jnp.float32))
    return slab


def autoencoder_forward(x, enc_params, dec_params):
    """x: (batch, ...) -> (control_vec, state_vec).

    enc_params / dec_params: list of (W_t, b) with W_t shaped (in, out)
    (PyTorch Linear weight pre-transposed).
    """
    batch = x.shape[0]
    x2d = x.reshape(batch, -1).astype(jnp.float32)            # matches x.view(B, -1)
    in_dim = x2d.shape[1]
    control_dim = enc_params[-1][0].shape[1]
    state_dim = dec_params[-1][0].shape[1]
    assert in_dim <= _LANE and control_dim <= _LANE and state_dim <= _LANE

    layer_params = list(enc_params) + list(dec_params)
    n_layers = len(layer_params)
    p_slab = _pack_params(layer_params)

    # Batch tiling: pad batch to a multiple of 8 sublanes; tile of up to 256
    # rows per grid step, grid sharded across TensorCores ("parallel").
    bt = _SUB * pl.cdiv(min(batch, 256), _SUB)
    b_pad = bt * pl.cdiv(batch, bt)
    grid = (b_pad // bt,)

    # Vreg-aligned, zero-padded input tile(s).
    x_pad = jnp.zeros((b_pad, _LANE), jnp.float32).at[:batch, :in_dim].set(x2d)

    flops = 2 * batch * sum(w.shape[0] * w.shape[1] for w, _ in layer_params)
    bytes_accessed = 4 * (p_slab.size + x_pad.size + 2 * b_pad * _LANE)

    kernel = _make_autoencoder_kernel(len(enc_params), len(dec_params))

    control_pad, state_pad = pl.pallas_call(
        kernel,
        out_shape=(
            jax.ShapeDtypeStruct((b_pad, _LANE), jnp.float32),
            jax.ShapeDtypeStruct((b_pad, _LANE), jnp.float32),
        ),
        grid=grid,
        in_specs=[
            pl.BlockSpec((bt, _LANE), lambda i: (i, 0)),
            pl.BlockSpec((n_layers, _BLK_ROWS, _LANE), lambda i: (0, 0, 0)),
        ],
        out_specs=(
            pl.BlockSpec((bt, _LANE), lambda i: (i, 0)),
            pl.BlockSpec((bt, _LANE), lambda i: (i, 0)),
        ),
        compiler_params=pltpu.CompilerParams(
            dimension_semantics=("parallel",),
        ),
        cost_estimate=pl.CostEstimate(
            flops=flops,
            transcendentals=batch * control_dim,
            bytes_accessed=bytes_accessed,
        ),
    )(x_pad, p_slab)

    control_vec = control_pad[:batch, :control_dim]
    state_vec = state_pad[:batch, :state_dim]
    return control_vec, state_vec


def _init_linear(key, fan_in, fan_out):
    """Deterministic PyTorch-style Linear init; weight pre-transposed to (in, out)."""
    kw, kb = jax.random.split(key)
    bound = 1.0 / jnp.sqrt(fan_in)
    w_t = jax.random.uniform(kw, (fan_in, fan_out), jnp.float32, -bound, bound)
    b = jax.random.uniform(kb, (fan_out,), jnp.float32, -bound, bound)
    return w_t, b


def _init_mlp(key, layer_sizes):
    params = []
    for i in range(1, len(layer_sizes)):
        key, sub = jax.random.split(key)
        params.append(_init_linear(sub, layer_sizes[i - 1], layer_sizes[i]))
    return params


def _reference_forward(x, enc_params, dec_params):
    """Plain-JAX reference for correctness checking."""
    h = x.reshape(x.shape[0], -1)
    for i, (w, b) in enumerate(enc_params):
        h = h @ w + b
        if i < len(enc_params) - 1:
            h = jnp.maximum(h, 0.0)
    control = jax.nn.sigmoid(h)
    h = control
    for i, (w, b) in enumerate(dec_params):
        h = h @ w + b
        if i < len(dec_params) - 1:
            h = jnp.maximum(h, 0.0)
    return control, h


if __name__ == "__main__":
    # "opt" configuration (soft-robot / encoder)
    rb_encoder_input_siz = 32
    mlp_hidden_sizes = [64, 32]
    rb_control_siz = 8
    decoder_hidden_sizes = [64]
    rb_state_siz = 48
    batch = 2

    key = jax.random.PRNGKey(0)
    k_x, k_enc, k_dec = jax.random.split(key, 3)

    # encoder: [rb_encoder_input_siz] + mlp_hidden_sizes + [rb_control_siz]
    enc_sizes = [rb_encoder_input_siz] + mlp_hidden_sizes + [rb_control_siz]
    # decoder: [rb_control_siz] + decoder_hidden_sizes + [rb_state_siz]
    dec_sizes = [rb_control_siz] + decoder_hidden_sizes + [rb_state_siz]

    enc_params = _init_mlp(k_enc, enc_sizes)
    dec_params = _init_mlp(k_dec, dec_sizes)

    # Input: (batch, 4, 8) — flattened to rb_encoder_input_siz=32 by the forward.
    x = jax.random.normal(k_x, (batch, 4, 8), dtype=jnp.float32)

    control_vec, state_vec = autoencoder_forward(x, enc_params, dec_params)
    jax.block_until_ready((control_vec, state_vec))

    ref_control, ref_state = _reference_forward(x, enc_params, dec_params)
    assert control_vec.shape == (batch, rb_control_siz)
    assert state_vec.shape == (batch, rb_state_siz)
    assert jnp.allclose(control_vec, ref_control, atol=1e-5, rtol=1e-5)
    assert jnp.allclose(state_vec, ref_state, atol=1e-5, rtol=1e-5)

    print("KERNEL_OK")
</pallas_src>

<mosaic_0001>
module attributes {stable_mosaic.version = 11 : i64} {
  func.func @kernel(%arg0: i32, %arg1: memref<8x128xf32, #tpu.memory_space<vmem>>, %arg2: memref<5x136x128xf32, #tpu.memory_space<vmem>>, %arg3: memref<8x128xf32, #tpu.memory_space<vmem>>, %arg4: memref<8x128xf32, #tpu.memory_space<vmem>>) attributes {dimension_semantics = [#tpu.dimension_semantics<parallel>], iteration_bounds = array<i64: 1>, scalar_prefetch = 0 : i64, scratch_operands = 0 : i64, tpu.core_type = #tpu.core_type<tc>, window_params = [{transform_indices = @transform_0, window_bounds = array<i64: 8, 128>}, {pipeline_mode = #tpu.pipeline_mode<synchronous>, transform_indices = @transform_1, window_bounds = array<i64: 5, 136, 128>}, {transform_indices = @transform_2, window_bounds = array<i64: 8, 128>}, {transform_indices = @transform_3, window_bounds = array<i64: 8, 128>}]} {
    %c0 = arith.constant 0 : index
    %c0_0 = arith.constant 0 : index
    %0 = vector.load %arg1[%c0, %c0_0] : memref<8x128xf32, #tpu.memory_space<vmem>>, vector<8x128xf32>
    %c0_1 = arith.constant 0 : index
    %c0_2 = arith.constant 0 : index
    %c0_3 = arith.constant 0 : index
    %1 = vector.load %arg2[%c0_1, %c0_2, %c0_3] : memref<5x136x128xf32, #tpu.memory_space<vmem>>, vector<1x128x128xf32>
    %2 = vector.shape_cast %1 : vector<1x128x128xf32> to vector<128x128xf32>
    %c0_4 = arith.constant 0 : index
    %c128 = arith.constant 128 : index
    %c0_5 = arith.constant 0 : index
    %3 = vector.load %arg2[%c0_4, %c128, %c0_5] : memref<5x136x128xf32, #tpu.memory_space<vmem>>, vector<1x1x128xf32>
    %4 = vector.shape_cast %3 : vector<1x1x128xf32> to vector<1x128xf32>
    %cst = arith.constant dense<0.000000e+00> : vector<8x128xf32>
    %5 = tpu.matmul %0, %2, %cst {dimension_numbers = #tpu.dot_dimension_numbers<[1], [0], [0], [1], [0, 0, 1, 1], [], []>} : vector<8x128xf32>, vector<128x128xf32>, vector<8x128xf32> -> vector<8x128xf32>
    %6 = vector.broadcast %4 : vector<1x128xf32> to vector<8x128xf32>
    %7 = arith.addf %5, %6 : vector<8x128xf32>
    %cst_6 = arith.constant 0.000000e+00 : f32
    %8 = vector.broadcast %cst_6 : f32 to vector<8x128xf32>
    %9 = arith.maximumf %7, %8 : vector<8x128xf32>
    %c1 = arith.constant 1 : index
    %c0_7 = arith.constant 0 : index
    %c0_8 = arith.constant 0 : index
    %10 = vector.load %arg2[%c1, %c0_7, %c0_8] : memref<5x136x128xf32, #tpu.memory_space<vmem>>, vector<1x128x128xf32>
    %11 = vector.shape_cast %10 : vector<1x128x128xf32> to vector<128x128xf32>
    %c1_9 = arith.constant 1 : index
    %c128_10 = arith.constant 128 : index
    %c0_11 = arith.constant 0 : index
    %12 = vector.load %arg2[%c1_9, %c128_10, %c0_11] : memref<5x136x128xf32, #tpu.memory_space<vmem>>, vector<1x1x128xf32>
    %13 = vector.shape_cast %12 : vector<1x1x128xf32> to vector<1x128xf32>
    %cst_12 = arith.constant dense<0.000000e+00> : vector<8x128xf32>
    %14 = tpu.matmul %9, %11, %cst_12 {dimension_numbers = #tpu.dot_dimension_numbers<[1], [0], [0], [1], [0, 0, 1, 1], [], []>} : vector<8x128xf32>, vector<128x128xf32>, vector<8x128xf32> -> vector<8x128xf32>
    %15 = vector.broadcast %13 : vector<1x128xf32> to vector<8x128xf32>
    %16 = arith.addf %14, %15 : vector<8x128xf32>
    %cst_13 = arith.constant 0.000000e+00 : f32
    %17 = vector.broadcast %cst_13 : f32 to vector<8x128xf32>
    %18 = arith.maximumf %16, %17 : vector<8x128xf32>
    %c2 = arith.constant 2 : index
    %c0_14 = arith.constant 0 : index
    %c0_15 = arith.constant 0 : index
    %19 = vector.load %arg2[%c2, %c0_14, %c0_15] : memref<5x136x128xf32, #tpu.memory_space<vmem>>, vector<1x128x128xf32>
    %20 = vector.shape_cast %19 : vector<1x128x128xf32> to vector<128x128xf32>
    %c2_16 = arith.constant 2 : index
    %c128_17 = arith.constant 128 : index
    %c0_18 = arith.constant 0 : index
    %21 = vector.load %arg2[%c2_16, %c128_17, %c0_18] : memref<5x136x128xf32, #tpu.memory_space<vmem>>, vector<1x1x128xf32>
    %22 = vector.shape_cast %21 : vector<1x1x128xf32> to vector<1x128xf32>
    %cst_19 = arith.constant dense<0.000000e+00> : vector<8x128xf32>
    %23 = tpu.matmul %18, %20, %cst_19 {dimension_numbers = #tpu.dot_dimension_numbers<[1], [0], [0], [1], [0, 0, 1, 1], [], []>} : vector<8x128xf32>, vector<128x128xf32>, vector<8x128xf32> -> vector<8x128xf32>
    %24 = vector.broadcast %22 : vector<1x128xf32> to vector<8x128xf32>
    %25 = arith.addf %23, %24 : vector<8x128xf32>
    %26 = arith.negf %25 : vector<8x128xf32>
    %27 = math.exp %26 : vector<8x128xf32>
    %cst_20 = arith.constant 1.000000e+00 : f32
    %28 = vector.broadcast %cst_20 : f32 to vector<8x128xf32>
    %29 = arith.addf %28, %27 : vector<8x128xf32>
    %30 = arith.divf %28, %29 : vector<8x128xf32>
    %c0_21 = arith.constant 0 : index
    %c0_22 = arith.constant 0 : index
    %31 = vector.load %arg3[%c0_21, %c0_22] : memref<8x128xf32, #tpu.memory_space<vmem>>, vector<8x128xf32>
    tpu.vector_store %arg3[%c0_21, %c0_22], %30 {strides = array<i32>} : memref<8x128xf32, #tpu.memory_space<vmem>>, vector<8x128xf32>,
    %c3 = arith.constant 3 : index
    %c0_23 = arith.constant 0 : index
    %c0_24 = arith.constant 0 : index
    %32 = vector.load %arg2[%c3, %c0_23, %c0_24] : memref<5x136x128xf32, #tpu.memory_space<vmem>>, vector<1x128x128xf32>
    %33 = vector.shape_cast %32 : vector<1x128x128xf32> to vector<128x128xf32>
    %c3_25 = arith.constant 3 : index
    %c128_26 = arith.constant 128 : index
    %c0_27 = arith.constant 0 : index
    %34 = vector.load %arg2[%c3_25, %c128_26, %c0_27] : memref<5x136x128xf32, #tpu.memory_space<vmem>>, vector<1x1x128xf32>
    %35 = vector.shape_cast %34 : vector<1x1x128xf32> to vector<1x128xf32>
    %cst_28 = arith.constant dense<0.000000e+00> : vector<8x128xf32>
    %36 = tpu.matmul %30, %33, %cst_28 {dimension_numbers = #tpu.dot_dimension_numbers<[1], [0], [0], [1], [0, 0, 1, 1], [], []>} : vector<8x128xf32>, vector<128x128xf32>, vector<8x128xf32> -> vector<8x128xf32>
    %37 = vector.broadcast %35 : vector<1x128xf32> to vector<8x128xf32>
    %38 = arith.addf %36, %37 : vector<8x128xf32>
    %cst_29 = arith.constant 0.000000e+00 : f32
    %39 = vector.broadcast %cst_29 : f32 to vector<8x128xf32>
    %40 = arith.maximumf %38, %39 : vector<8x128xf32>
    %c4 = arith.constant 4 : index
    %c0_30 = arith.constant 0 : index
    %c0_31 = arith.constant 0 : index
    %41 = vector.load %arg2[%c4, %c0_30, %c0_31] : memref<5x136x128xf32, #tpu.memory_space<vmem>>, vector<1x128x128xf32>
    %42 = vector.shape_cast %41 : vector<1x128x128xf32> to vector<128x128xf32>
    %c4_32 = arith.constant 4 : index
    %c128_33 = arith.constant 128 : index
    %c0_34 = arith.constant 0 : index
    %43 = vector.load %arg2[%c4_32, %c128_33, %c0_34] : memref<5x136x128xf32, #tpu.memory_space<vmem>>, vector<1x1x128xf32>
    %44 = vector.shape_cast %43 : vector<1x1x128xf32> to vector<1x128xf32>
    %cst_35 = arith.constant dense<0.000000e+00> : vector<8x128xf32>
    %45 = tpu.matmul %40, %42, %cst_35 {dimension_numbers = #tpu.dot_dimension_numbers<[1], [0], [0], [1], [0, 0, 1, 1], [], []>} : vector<8x128xf32>, vector<128x128xf32>, vector<8x128xf32> -> vector<8x128xf32>
    %46 = vector.broadcast %44 : vector<1x128xf32> to vector<8x128xf32>
    %47 = arith.addf %45, %46 : vector<8x128xf32>
    %c0_36 = arith.constant 0 : index
    %c0_37 = arith.constant 0 : index
    %48 = vector.load %arg4[%c0_36, %c0_37] : memref<8x128xf32, #tpu.memory_space<vmem>>, vector<8x128xf32>
    tpu.vector_store %arg4[%c0_36, %c0_37], %47 {strides = array<i32>} : memref<8x128xf32, #tpu.memory_space<vmem>>, vector<8x128xf32>,
    return
  }
  func.func @transform_0(%arg0: i32) -> (i32, i32) {
    %c0_i32 = arith.constant 0 : i32
    %c0_i32_0 = arith.constant 0 : i32
    return %arg0, %c0_i32 : i32, i32
  }
  func.func @transform_1(%arg0: i32) -> (i32, i32, i32) {
    %c0_i32 = arith.constant 0 : i32
    %c0_i32_0 = arith.constant 0 : i32
    %c0_i32_1 = arith.constant 0 : i32
    %c0_i32_2 = arith.constant 0 : i32
    return %c0_i32, %c0_i32_0, %c0_i32_1 : i32, i32, i32
  }
  func.func @transform_2(%arg0: i32) -> (i32, i32) {
    %c0_i32 = arith.constant 0 : i32
    %c0_i32_0 = arith.constant 0 : i32
    return %arg0, %c0_i32 : i32, i32
  }
  func.func @transform_3(%arg0: i32) -> (i32, i32) {
    %c0_i32 = arith.constant 0 : i32
    %c0_i32_0 = arith.constant 0 : i32
    return %arg0, %c0_i32 : i32, i32
  }
}

</mosaic_0001>

<llo_original>
// kernel: tpu_custom_call.1
$region0: #{tpu_custom_call.1}
  #allocation0 [shape = 'u32[]', space=smem, size = 0x4, offset = 0x4, fixed_abs, tag = 'smem constant byte address 0x4 - core index']
  #allocation1 [shape = 'u32[144,128]{1,0:T(1,128)}', space=vmem, size = 0x12000, scoped, tag = 'internal scratch']
  %s0 = inlined_call_operand.hbm [shape: f32[8,128], index: 0, kind: input, shape index: {}]
  %s1 = inlined_call_operand.hbm [shape: f32[5,136,128], index: 1, kind: input, shape index: {}]
  %s2 = inlined_call_operand.hbm [shape: f32[8,128], index: 2, kind: output, shape index: {0}]
  %s3 = inlined_call_operand.hbm [shape: f32[8,128], index: 3, kind: output, shape index: {1}]
  %4 = xla_tuple %s2, %s3
  %s5 = sld [smem:[#allocation0]]
  $region34: #{tpu_custom_call.1} parent=0
    _
  %s7 = ssub.s32 1, %s5
  %s8 = scalar_select 0, %s7, %s5
  $region1: #{tpu_custom_call.1} parent=0
    #allocation2 [shape = 'u8[4096]{0}', space=vmem, size = 0x1000, scoped, tag = 'input window, operand 0, single buffered']
    #allocation3 [shape = 's32[1]{0}', space=sflag, size = 0x4, scoped, tag = 'scoped memory for tpu_custom_call.1']
    #allocation4 [shape = 's32[1]{0}', space=sflag, size = 0x4, scoped, tag = 'scoped memory for tpu_custom_call.1']
    #allocation5 [shape = 'u8[348160]{0}', space=vmem, size = 0x55000, scoped, tag = 'input window, operand 1, single buffered']
    #allocation6 [shape = 's32[1]{0}', space=sflag, size = 0x4, scoped, tag = 'scoped memory for tpu_custom_call.1']
    #allocation7 [shape = 'u8[4096]{0}', space=vmem, size = 0x1000, scoped, tag = 'output window, operand 0, single buffered']
    #allocation8 [shape = 'u8[4096]{0}', space=vmem, size = 0x1000, scoped, tag = 'output window, operand 1, single buffered']
    #allocation9 [shape = 's32[1]{0}', space=sflag, size = 0x4, scoped, tag = 'scoped memory for tpu_custom_call.1']
    %9 = vsyncpa [#allocation3], 0
    %10 = vsyncpa [#allocation6], 0
    %11 = vsyncpa [#allocation4], 0
    %12 = vsyncpa [#allocation9], 0
    // Predicated region
    $region2: #{tpu_custom_call.1} parent=1 // pred_check
      _
    $region3: #{tpu_custom_call.1} parent=1 // pred_check_branch
      %14 = sbr.rel (0) target = $region5
    $region4: #{tpu_custom_call.1} parent=1 // pred_region
      %s16 = ssub.s32 128, 128
      %17 = vsyncadd [#allocation3], %s16
      %s19 = sshll.u32 [#allocation2], 4
      %s20 = int_to_ptr.vmem [resolvable:$true] %s19
      %22 = dma.hbm_to_vmem [thread:$0]  %s0, 128, %s20, [#allocation3]
    $region5: #{tpu_custom_call.1} parent=1 // pred_fallthru
      _
    // Predicated region
    $region6: #{tpu_custom_call.1} parent=1 // pred_check
      _
    $region7: #{tpu_custom_call.1} parent=1 // pred_check_branch
      %24 = sbr.rel (0) target = $region9
    $region8: #{tpu_custom_call.1} parent=1 // pred_region
      %s26 = ssub.s32 10880, 10880
      %27 = vsyncadd [#allocation6], %s26
      %s28 = sshll.u32 [#allocation5], 4
      %s29 = int_to_ptr.vmem [resolvable:$true] %s28
      %34 = dma.hbm_to_vmem [thread:$0]  %s1, 10880, %s29, [#allocation6], 128, 128, 8
    $region9: #{tpu_custom_call.1} parent=1 // pred_fallthru
      _
    // Predicated region
    $region10: #{tpu_custom_call.1} parent=1 // pred_check
      _
    $region11: #{tpu_custom_call.1} parent=1 // pred_check_branch
      %36 = sbr.rel (0) target = $region13
    $region12: #{tpu_custom_call.1} parent=1 // pred_region
      %37 = dma.done [#allocation3], 128
    $region13: #{tpu_custom_call.1} parent=1 // pred_fallthru
      _
    // Predicated region
    $region14: #{tpu_custom_call.1} parent=1 // pred_check
      _
    $region15: #{tpu_custom_call.1} parent=1 // pred_check_branch
      %39 = sbr.rel (0) target = $region17
    $region16: #{tpu_custom_call.1} parent=1 // pred_region
      %40 = dma.done [#allocation6], 10880
    $region17: #{tpu_custom_call.1} parent=1 // pred_fallthru
      _
    %v41 = vld [vmem:[#allocation2] sm:$0xff]
    %v42 = vld [vmem:[#allocation5] sm:$0xff]
    %v43 = vld [vmem:[#allocation5 + $0x8] sm:$0xff]
    %v44 = vld [vmem:[#allocation5 + $0x10] sm:$0xff]
    %v45 = vld [vmem:[#allocation5 + $0x18] sm:$0xff]
    %v46 = vld [vmem:[#allocation5 + $0x20] sm:$0xff]
    %v47 = vld [vmem:[#allocation5 + $0x28] sm:$0xff]
    %v48 = vld [vmem:[#allocation5 + $0x30] sm:$0xff]
    %v49 = vld [vmem:[#allocation5 + $0x38] sm:$0xff]
    %v50 = vld [vmem:[#allocation5 + $0x40] sm:$0xff]
    %v51 = vld [vmem:[#allocation5 + $0x48] sm:$0xff]
    %v52 = vld [vmem:[#allocation5 + $0x50] sm:$0xff]
    %v53 = vld [vmem:[#allocation5 + $0x58] sm:$0xff]
    %v54 = vld [vmem:[#allocation5 + $0x60] sm:$0xff]
    %v55 = vld [vmem:[#allocation5 + $0x68] sm:$0xff]
    %v56 = vld [vmem:[#allocation5 + $0x70] sm:$0xff]
    %v57 = vld [vmem:[#allocation5 + $0x78] sm:$0xff]
    %v58 = vld [vmem:[#allocation5 + $0x80] sm:$0x1]
    %v59 = vlaneseq
    %v60 = vshrl.u32 %v59, 7
    %v61 = vsub.s32 0, %v60
    %v62 = vrot.slane %v58, %v61
    %63 = vmatprep.subr.mxu0 0.0
    %64 = vmatpush1.msra.mxu0 %v57
    %65 = vmatprep.subr.mxu0 0.0
    %66 = vmatpush1.msra.mxu0 %v56
    %67 = vmatprep.subr.mxu0 0.0
    %68 = vmatpush1.msra.mxu0 %v55
    %69 = vmatprep.subr.mxu0 0.0
    %70 = vmatpush1.msra.mxu0 %v54
    %71 = vmatprep.subr.mxu0 0.0
    %72 = vmatpush1.msra.mxu0 %v53
    %73 = vmatprep.subr.mxu0 0.0
    %74 = vmatpush1.msra.mxu0 %v52
    %75 = vmatprep.subr.mxu0 0.0
    %76 = vmatpush1.msra.mxu0 %v51
    %77 = vmatprep.subr.mxu0 0.0
    %78 = vmatpush1.msra.mxu0 %v50
    %79 = vmatprep.subr.mxu0 0.0
    %80 = vmatpush1.msra.mxu0 %v49
    %81 = vmatprep.subr.mxu0 0.0
    %82 = vmatpush1.msra.mxu0 %v48
    %83 = vmatprep.subr.mxu0 0.0
    %84 = vmatpush1.msra.mxu0 %v47
    %85 = vmatprep.subr.mxu0 0.0
    %86 = vmatpush1.msra.mxu0 %v46
    %87 = vmatprep.subr.mxu0 0.0
    %88 = vmatpush1.msra.mxu0 %v45
    %89 = vmatprep.subr.mxu0 0.0
    %90 = vmatpush1.msra.mxu0 %v44
    %91 = vmatprep.subr.mxu0 0.0
    %92 = vmatpush1.msra.mxu0 %v43
    %93 = vmatprep.subr.mxu0 0.0
    %94 = vmatpush1.msra.mxu0 %v42
    %95 = vmatprep.subr.mxu0 0.0
    %96 = vmatpush2.msra.mxu0 0.0
    %97 = vmatprep.subr.mxu0 0.0
    %98 = vmatpush2.msra.mxu0 0.0
    %99 = vmatprep.subr.mxu0 0.0
    %100 = vmatpush2.msra.mxu0 0.0
    %101 = vmatprep.subr.mxu0 0.0
    %102 = vmatpush2.msra.mxu0 0.0
    %103 = vmatprep.subr.mxu0 0.0
    %104 = vmatpush2.msra.mxu0 0.0
    %105 = vmatprep.subr.mxu0 0.0
    %106 = vmatpush2.msra.mxu0 0.0
    %107 = vmatprep.subr.mxu0 0.0
    %108 = vmatpush2.msra.mxu0 0.0
    %109 = vmatprep.subr.mxu0 0.0
    %110 = vmatpush2.msra.mxu0 0.0
    %111 = vmatprep.subr.mxu0 0.0
    %112 = vmatpush2.msra.mxu0 0.0
    %113 = vmatprep.subr.mxu0 0.0
    %114 = vmatpush2.msra.mxu0 0.0
    %115 = vmatprep.subr.mxu0 0.0
    %116 = vmatpush2.msra.mxu0 0.0
    %117 = vmatprep.subr.mxu0 0.0
    %118 = vmatpush2.msra.mxu0 0.0
    %119 = vmatprep.subr.mxu0 0.0
    %120 = vmatpush2.msra.mxu0 0.0
    %121 = vmatprep.subr.mxu0 0.0
    %122 = vmatpush2.msra.mxu0 0.0
    %123 = vmatprep.subr.mxu0 0.0
    %124 = vmatpush2.msra.mxu0 0.0
    %125 = vmatprep.subr.mxu0 0.0
    %126 = vmatpush2.msra.mxu0 0.0
    %127 = vmatprep.mubr.f32.mxu0 0.0
    %128 = vmatmul.mubr.f32.gmra.mxu0 %v41
    %v129 = vpop.f32.mrf.mxu0
    %v130 = vadd.f32 %v62, %v129
    %v131 = vpop.f32.mrf.mxu0
    %132 = vdwg.mxu0
    %v133 = vmax.f32 %v130, 0.0
    %s134 = scalar_lea.vmem [#allocation5], 136
    %v135 = vld [vmem:[%s134] sm:$0xff]
    %v136 = vld [vmem:[%s134 + $0x8] sm:$0xff]
    %v137 = vld [vmem:[%s134 + $0x10] sm:$0xff]
    %v138 = vld [vmem:[%s134 + $0x18] sm:$0xff]
    %v139 = vld [vmem:[%s134 + $0x20] sm:$0xff]
    %v140 = vld [vmem:[%s134 + $0x28] sm:$0xff]
    %v141 = vld [vmem:[%s134 + $0x30] sm:$0xff]
    %v142 = vld [vmem:[%s134 + $0x38] sm:$0xff]
    %v143 = vld [vmem:[%s134 + $0x40] sm:$0xff]
    %v144 = vld [vmem:[%s134 + $0x48] sm:$0xff]
    %v145 = vld [vmem:[%s134 + $0x50] sm:$0xff]
    %v146 = vld [vmem:[%s134 + $0x58] sm:$0xff]
    %v147 = vld [vmem:[%s134 + $0x60] sm:$0xff]
    %v148 = vld [vmem:[%s134 + $0x68] sm:$0xff]
    %v149 = vld [vmem:[%s134 + $0x70] sm:$0xff]
    %v150 = vld [vmem:[%s134 + $0x78] sm:$0xff]
    %v151 = vld [vmem:[%s134 + $0x80] sm:$0x1]
    %v152 = vlaneseq
    %v153 = vshrl.u32 %v152, 7
    %v154 = vsub.s32 0, %v153
    %v155 = vrot.slane %v151, %v154
    %156 = vmatprep.subr.mxu0 0.0
    %157 = vmatpush1.msra.mxu0 %v150
    %158 = vmatprep.subr.mxu0 0.0
    %159 = vmatpush1.msra.mxu0 %v149
    %160 = vmatprep.subr.mxu0 0.0
    %161 = vmatpush1.msra.mxu0 %v148
    %162 = vmatprep.subr.mxu0 0.0
    %163 = vmatpush1.msra.mxu0 %v147
    %164 = vmatprep.subr.mxu0 0.0
    %165 = vmatpush1.msra.mxu0 %v146
    %166 = vmatprep.subr.mxu0 0.0
    %167 = vmatpush1.msra.mxu0 %v145
    %168 = vmatprep.subr.mxu0 0.0
    %169 = vmatpush1.msra.mxu0 %v144
    %170 = vmatprep.subr.mxu0 0.0
    %171 = vmatpush1.msra.mxu0 %v143
    %172 = vmatprep.subr.mxu0 0.0
    %173 = vmatpush1.msra.mxu0 %v142
    %174 = vmatprep.subr.mxu0 0.0
    %175 = vmatpush1.msra.mxu0 %v141
    %176 = vmatprep.subr.mxu0 0.0
    %177 = vmatpush1.msra.mxu0 %v140
    %178 = vmatprep.subr.mxu0 0.0
    %179 = vmatpush1.msra.mxu0 %v139
    %180 = vmatprep.subr.mxu0 0.0
    %181 = vmatpush1.msra.mxu0 %v138
    %182 = vmatprep.subr.mxu0 0.0
    %183 = vmatpush1.msra.mxu0 %v137
    %184 = vmatprep.subr.mxu0 0.0
    %185 = vmatpush1.msra.mxu0 %v136
    %186 = vmatprep.subr.mxu0 0.0
    %187 = vmatpush1.msra.mxu0 %v135
    %188 = vmatprep.subr.mxu0 0.0
    %189 = vmatpush2.msra.mxu0 0.0
    %190 = vmatprep.subr.mxu0 0.0
    %191 = vmatpush2.msra.mxu0 0.0
    %192 = vmatprep.subr.mxu0 0.0
    %193 = vmatpush2.msra.mxu0 0.0
    %194 = vmatprep.subr.mxu0 0.0
    %195 = vmatpush2.msra.mxu0 0.0
    %196 = vmatprep.subr.mxu0 0.0
    %197 = vmatpush2.msra.mxu0 0.0
    %198 = vmatprep.subr.mxu0 0.0
    %199 = vmatpush2.msra.mxu0 0.0
    %200 = vmatprep.subr.mxu0 0.0
    %201 = vmatpush2.msra.mxu0 0.0
    %202 = vmatprep.subr.mxu0 0.0
    %203 = vmatpush2.msra.mxu0 0.0
    %204 = vmatprep.subr.mxu0 0.0
    %205 = vmatpush2.msra.mxu0 0.0
    %206 = vmatprep.subr.mxu0 0.0
    %207 = vmatpush2.msra.mxu0 0.0
    %208 = vmatprep.subr.mxu0 0.0
    %209 = vmatpush2.msra.mxu0 0.0
    %210 = vmatprep.subr.mxu0 0.0
    %211 = vmatpush2.msra.mxu0 0.0
    %212 = vmatprep.subr.mxu0 0.0
    %213 = vmatpush2.msra.mxu0 0.0
    %214 = vmatprep.subr.mxu0 0.0
    %215 = vmatpush2.msra.mxu0 0.0
    %216 = vmatprep.subr.mxu0 0.0
    %217 = vmatpush2.msra.mxu0 0.0
    %218 = vmatprep.subr.mxu0 0.0
    %219 = vmatpush2.msra.mxu0 0.0
    %220 = vmatprep.mubr.f32.mxu0 0.0
    %221 = vmatmul.mubr.f32.gmra.mxu0 %v133
    %v222 = vpop.f32.mrf.mxu0
    %v223 = vadd.f32 %v155, %v222
    %v224 = vpop.f32.mrf.mxu0
    %225 = vdwg.mxu0
    %v226 = vmax.f32 %v223, 0.0
    %s227 = scalar_lea.vmem [#allocation5], 272
    %v228 = vld [vmem:[%s227] sm:$0xff]
    %v229 = vld [vmem:[%s227 + $0x8] sm:$0xff]
    %v230 = vld [vmem:[%s227 + $0x10] sm:$0xff]
    %v231 = vld [vmem:[%s227 + $0x18] sm:$0xff]
    %v232 = vld [vmem:[%s227 + $0x20] sm:$0xff]
    %v233 = vld [vmem:[%s227 + $0x28] sm:$0xff]
    %v234 = vld [vmem:[%s227 + $0x30] sm:$0xff]
    %v235 = vld [vmem:[%s227 + $0x38] sm:$0xff]
    %v236 = vld [vmem:[%s227 + $0x40] sm:$0xff]
    %v237 = vld [vmem:[%s227 + $0x48] sm:$0xff]
    %v238 = vld [vmem:[%s227 + $0x50] sm:$0xff]
    %v239 = vld [vmem:[%s227 + $0x58] sm:$0xff]
    %v240 = vld [vmem:[%s227 + $0x60] sm:$0xff]
    %v241 = vld [vmem:[%s227 + $0x68] sm:$0xff]
    %v242 = vld [vmem:[%s227 + $0x70] sm:$0xff]
    %v243 = vld [vmem:[%s227 + $0x78] sm:$0xff]
    %v244 = vld [vmem:[%s227 + $0x80] sm:$0x1]
    %v245 = vlaneseq
    %v246 = vshrl.u32 %v245, 7
    %v247 = vsub.s32 0, %v246
    %v248 = vrot.slane %v244, %v247
    %249 = vmatprep.subr.mxu0 0.0
    %250 = vmatpush1.msra.mxu0 %v243
    %251 = vmatprep.subr.mxu0 0.0
    %252 = vmatpush1.msra.mxu0 %v242
    %253 = vmatprep.subr.mxu0 0.0
    %254 = vmatpush1.msra.mxu0 %v241
    %255 = vmatprep.subr.mxu0 0.0
    %256 = vmatpush1.msra.mxu0 %v240
    %257 = vmatprep.subr.mxu0 0.0
    %258 = vmatpush1.msra.mxu0 %v239
    %259 = vmatprep.subr.mxu0 0.0
    %260 = vmatpush1.msra.mxu0 %v238
    %261 = vmatprep.subr.mxu0 0.0
    %262 = vmatpush1.msra.mxu0 %v237
    %263 = vmatprep.subr.mxu0 0.0
    %264 = vmatpush1.msra.mxu0 %v236
    %265 = vmatprep.subr.mxu0 0.0
    %266 = vmatpush1.msra.mxu0 %v235
    %267 = vmatprep.subr.mxu0 0.0
    %268 = vmatpush1.msra.mxu0 %v234
    %269 = vmatprep.subr.mxu0 0.0
    %270 = vmatpush1.msra.mxu0 %v233
    %271 = vmatprep.subr.mxu0 0.0
    %272 = vmatpush1.msra.mxu0 %v232
    %273 = vmatprep.subr.mxu0 0.0
    %274 = vmatpush1.msra.mxu0 %v231
    %275 = vmatprep.subr.mxu0 0.0
    %276 = vmatpush1.msra.mxu0 %v230
    %277 = vmatprep.subr.mxu0 0.0
    %278 = vmatpush1.msra.mxu0 %v229
    %279 = vmatprep.subr.mxu0 0.0
    %280 = vmatpush1.msra.mxu0 %v228
    %281 = vmatprep.subr.mxu0 0.0
    %282 = vmatpush2.msra.mxu0 0.0
    %283 = vmatprep.subr.mxu0 0.0
    %284 = vmatpush2.msra.mxu0 0.0
    %285 = vmatprep.subr.mxu0 0.0
    %286 = vmatpush2.msra.mxu0 0.0
    %287 = vmatprep.subr.mxu0 0.0
    %288 = vmatpush2.msra.mxu0 0.0
    %289 = vmatprep.subr.mxu0 0.0
    %290 = vmatpush2.msra.mxu0 0.0
    %291 = vmatprep.subr.mxu0 0.0
    %292 = vmatpush2.msra.mxu0 0.0
    %293 = vmatprep.subr.mxu0 0.0
    %294 = vmatpush2.msra.mxu0 0.0
    %295 = vmatprep.subr.mxu0 0.0
    %296 = vmatpush2.msra.mxu0 0.0
    %297 = vmatprep.subr.mxu0 0.0
    %298 = vmatpush2.msra.mxu0 0.0
    %299 = vmatprep.subr.mxu0 0.0
    %300 = vmatpush2.msra.mxu0 0.0
    %301 = vmatprep.subr.mxu0 0.0
    %302 = vmatpush2.msra.mxu0 0.0
    %303 = vmatprep.subr.mxu0 0.0
    %304 = vmatpush2.msra.mxu0 0.0
    %305 = vmatprep.subr.mxu0 0.0
    %306 = vmatpush2.msra.mxu0 0.0
    %307 = vmatprep.subr.mxu0 0.0
    %308 = vmatpush2.msra.mxu0 0.0
    %309 = vmatprep.subr.mxu0 0.0
    %310 = vmatpush2.msra.mxu0 0.0
    %311 = vmatprep.subr.mxu0 0.0
    %312 = vmatpush2.msra.mxu0 0.0
    %313 = vmatprep.mubr.f32.mxu0 0.0
    %314 = vmatmul.mubr.f32.gmra.mxu0 %v226
    %v315 = vpop.f32.mrf.mxu0
    %v316 = vadd.f32 %v248, %v315
    %v317 = vpop.f32.mrf.mxu0
    %318 = vdwg.mxu0
    %v319 = vxor.u32 %v316, 2147483648
    %v320 = vmul.f32 %v319, 1.442695
    %v321 = vpow.pop %v320
    %v322 = vadd.f32 %v321, 1.0
    %v323 = vrcp.pop %v322
    %v324 = vmul.f32 1.0, %v323
    %325 = vst [vmem:[#allocation7] sm:$0xff] %v324
    %s326 = scalar_lea.vmem [#allocation5], 408
    %v327 = vld [vmem:[%s326] sm:$0xff]
    %v328 = vld [vmem:[%s326 + $0x8] sm:$0xff]
    %v329 = vld [vmem:[%s326 + $0x10] sm:$0xff]
    %v330 = vld [vmem:[%s326 + $0x18] sm:$0xff]
    %v331 = vld [vmem:[%s326 + $0x20] sm:$0xff]
    %v332 = vld [vmem:[%s326 + $0x28] sm:$0xff]
    %v333 = vld [vmem:[%s326 + $0x30] sm:$0xff]
    %v334 = vld [vmem:[%s326 + $0x38] sm:$0xff]
    %v335 = vld [vmem:[%s326 + $0x40] sm:$0xff]
    %v336 = vld [vmem:[%s326 + $0x48] sm:$0xff]
    %v337 = vld [vmem:[%s326 + $0x50] sm:$0xff]
    %v338 = vld [vmem:[%s326 + $0x58] sm:$0xff]
    %v339 = vld [vmem:[%s326 + $0x60] sm:$0xff]
    %v340 = vld [vmem:[%s326 + $0x68] sm:$0xff]
    %v341 = vld [vmem:[%s326 + $0x70] sm:$0xff]
    %v342 = vld [vmem:[%s326 + $0x78] sm:$0xff]
    %v343 = vld [vmem:[%s326 + $0x80] sm:$0x1]
    %v344 = vlaneseq
    %v345 = vshrl.u32 %v344, 7
    %v346 = vsub.s32 0, %v345
    %v347 = vrot.slane %v343, %v346
    %348 = vmatprep.subr.mxu0 0.0
    %349 = vmatpush1.msra.mxu0 %v342
    %350 = vmatprep.subr.mxu0 0.0
    %351 = vmatpush1.msra.mxu0 %v341
    %352 = vmatprep.subr.mxu0 0.0
    %353 = vmatpush1.msra.mxu0 %v340
    %354 = vmatprep.subr.mxu0 0.0
    %355 = vmatpush1.msra.mxu0 %v339
    %356 = vmatprep.subr.mxu0 0.0
    %357 = vmatpush1.msra.mxu0 %v338
    %358 = vmatprep.subr.mxu0 0.0
    %359 = vmatpush1.msra.mxu0 %v337
    %360 = vmatprep.subr.mxu0 0.0
    %361 = vmatpush1.msra.mxu0 %v336
    %362 = vmatprep.subr.mxu0 0.0
    %363 = vmatpush1.msra.mxu0 %v335
    %364 = vmatprep.subr.mxu0 0.0
    %365 = vmatpush1.msra.mxu0 %v334
    %366 = vmatprep.subr.mxu0 0.0
    %367 = vmatpush1.msra.mxu0 %v333
    %368 = vmatprep.subr.mxu0 0.0
    %369 = vmatpush1.msra.mxu0 %v332
    %370 = vmatprep.subr.mxu0 0.0
    %371 = vmatpush1.msra.mxu0 %v331
    %372 = vmatprep.subr.mxu0 0.0
    %373 = vmatpush1.msra.mxu0 %v330
    %374 = vmatprep.subr.mxu0 0.0
    %375 = vmatpush1.msra.mxu0 %v329
    %376 = vmatprep.subr.mxu0 0.0
    %377 = vmatpush1.msra.mxu0 %v328
    %378 = vmatprep.subr.mxu0 0.0
    %379 = vmatpush1.msra.mxu0 %v327
    %380 = vmatprep.subr.mxu0 0.0
    %381 = vmatpush2.msra.mxu0 0.0
    %382 = vmatprep.subr.mxu0 0.0
    %383 = vmatpush2.msra.mxu0 0.0
    %384 = vmatprep.subr.mxu0 0.0
    %385 = vmatpush2.msra.mxu0 0.0
    %386 = vmatprep.subr.mxu0 0.0
    %387 = vmatpush2.msra.mxu0 0.0
    %388 = vmatprep.subr.mxu0 0.0
    %389 = vmatpush2.msra.mxu0 0.0
    %390 = vmatprep.subr.mxu0 0.0
    %391 = vmatpush2.msra.mxu0 0.0
    %392 = vmatprep.subr.mxu0 0.0
    %393 = vmatpush2.msra.mxu0 0.0
    %394 = vmatprep.subr.mxu0 0.0
    %395 = vmatpush2.msra.mxu0 0.0
    %396 = vmatprep.subr.mxu0 0.0
    %397 = vmatpush2.msra.mxu0 0.0
    %398 = vmatprep.subr.mxu0 0.0
    %399 = vmatpush2.msra.mxu0 0.0
    %400 = vmatprep.subr.mxu0 0.0
    %401 = vmatpush2.msra.mxu0 0.0
    %402 = vmatprep.subr.mxu0 0.0
    %403 = vmatpush2.msra.mxu0 0.0
    %404 = vmatprep.subr.mxu0 0.0
    %405 = vmatpush2.msra.mxu0 0.0
    %406 = vmatprep.subr.mxu0 0.0
    %407 = vmatpush2.msra.mxu0 0.0
    %408 = vmatprep.subr.mxu0 0.0
    %409 = vmatpush2.msra.mxu0 0.0
    %410 = vmatprep.subr.mxu0 0.0
    %411 = vmatpush2.msra.mxu0 0.0
    %412 = vmatprep.mubr.f32.mxu0 0.0
    %413 = vmatmul.mubr.f32.gmra.mxu0 %v324
    %v414 = vpop.f32.mrf.mxu0
    %v415 = vadd.f32 %v347, %v414
    %v416 = vpop.f32.mrf.mxu0
    %417 = vdwg.mxu0
    %v418 = vmax.f32 %v415, 0.0
    %s419 = scalar_lea.vmem [#allocation5], 544
    %v420 = vld [vmem:[%s419] sm:$0xff]
    %v421 = vld [vmem:[%s419 + $0x8] sm:$0xff]
    %v422 = vld [vmem:[%s419 + $0x10] sm:$0xff]
    %v423 = vld [vmem:[%s419 + $0x18] sm:$0xff]
    %v424 = vld [vmem:[%s419 + $0x20] sm:$0xff]
    %v425 = vld [vmem:[%s419 + $0x28] sm:$0xff]
    %v426 = vld [vmem:[%s419 + $0x30] sm:$0xff]
    %v427 = vld [vmem:[%s419 + $0x38] sm:$0xff]
    %v428 = vld [vmem:[%s419 + $0x40] sm:$0xff]
    %v429 = vld [vmem:[%s419 + $0x48] sm:$0xff]
    %v430 = vld [vmem:[%s419 + $0x50] sm:$0xff]
    %v431 = vld [vmem:[%s419 + $0x58] sm:$0xff]
    %v432 = vld [vmem:[%s419 + $0x60] sm:$0xff]
    %v433 = vld [vmem:[%s419 + $0x68] sm:$0xff]
    %v434 = vld [vmem:[%s419 + $0x70] sm:$0xff]
    %v435 = vld [vmem:[%s419 + $0x78] sm:$0xff]
    %v436 = vld [vmem:[%s419 + $0x80] sm:$0x1]
    %v437 = vlaneseq
    %v438 = vshrl.u32 %v437, 7
    %v439 = vsub.s32 0, %v438
    %v440 = vrot.slane %v436, %v439
    %441 = vmatprep.subr.mxu0 0.0
    %442 = vmatpush1.msra.mxu0 %v435
    %443 = vmatprep.subr.mxu0 0.0
    %444 = vmatpush1.msra.mxu0 %v434
    %445 = vmatprep.subr.mxu0 0.0
    %446 = vmatpush1.msra.mxu0 %v433
    %447 = vmatprep.subr.mxu0 0.0
    %448 = vmatpush1.msra.mxu0 %v432
    %449 = vmatprep.subr.mxu0 0.0
    %450 = vmatpush1.msra.mxu0 %v431
    %451 = vmatprep.subr.mxu0 0.0
    %452 = vmatpush1.msra.mxu0 %v430
    %453 = vmatprep.subr.mxu0 0.0
    %454 = vmatpush1.msra.mxu0 %v429
    %455 = vmatprep.subr.mxu0 0.0
    %456 = vmatpush1.msra.mxu0 %v428
    %457 = vmatprep.subr.mxu0 0.0
    %458 = vmatpush1.msra.mxu0 %v427
    %459 = vmatprep.subr.mxu0 0.0
    %460 = vmatpush1.msra.mxu0 %v426
    %461 = vmatprep.subr.mxu0 0.0
    %462 = vmatpush1.msra.mxu0 %v425
    %463 = vmatprep.subr.mxu0 0.0
    %464 = vmatpush1.msra.mxu0 %v424
    %465 = vmatprep.subr.mxu0 0.0
    %466 = vmatpush1.msra.mxu0 %v423
    %467 = vmatprep.subr.mxu0 0.0
    %468 = vmatpush1.msra.mxu0 %v422
    %469 = vmatprep.subr.mxu0 0.0
    %470 = vmatpush1.msra.mxu0 %v421
    %471 = vmatprep.subr.mxu0 0.0
    %472 = vmatpush1.msra.mxu0 %v420
    %473 = vmatprep.subr.mxu0 0.0
    %474 = vmatpush2.msra.mxu0 0.0
    %475 = vmatprep.subr.mxu0 0.0
    %476 = vmatpush2.msra.mxu0 0.0
    %477 = vmatprep.subr.mxu0 0.0
    %478 = vmatpush2.msra.mxu0 0.0
    %479 = vmatprep.subr.mxu0 0.0
    %480 = vmatpush2.msra.mxu0 0.0
    %481 = vmatprep.subr.mxu0 0.0
    %482 = vmatpush2.msra.mxu0 0.0
    %483 = vmatprep.subr.mxu0 0.0
    %484 = vmatpush2.msra.mxu0 0.0
    %485 = vmatprep.subr.mxu0 0.0
    %486 = vmatpush2.msra.mxu0 0.0
    %487 = vmatprep.subr.mxu0 0.0
    %488 = vmatpush2.msra.mxu0 0.0
    %489 = vmatprep.subr.mxu0 0.0
    %490 = vmatpush2.msra.mxu0 0.0
    %491 = vmatprep.subr.mxu0 0.0
    %492 = vmatpush2.msra.mxu0 0.0
    %493 = vmatprep.subr.mxu0 0.0
    %494 = vmatpush2.msra.mxu0 0.0
    %495 = vmatprep.subr.mxu0 0.0
    %496 = vmatpush2.msra.mxu0 0.0
    %497 = vmatprep.subr.mxu0 0.0
    %498 = vmatpush2.msra.mxu0 0.0
    %499 = vmatprep.subr.mxu0 0.0
    %500 = vmatpush2.msra.mxu0 0.0
    %501 = vmatprep.subr.mxu0 0.0
    %502 = vmatpush2.msra.mxu0 0.0
    %503 = vmatprep.subr.mxu0 0.0
    %504 = vmatpush2.msra.mxu0 0.0
    %505 = vmatprep.mubr.f32.mxu0 0.0
    %506 = vmatmul.mubr.f32.gmra.mxu0 %v418
    %v507 = vpop.f32.mrf.mxu0
    %v508 = vadd.f32 %v440, %v507
    %v509 = vpop.f32.mrf.mxu0
    %510 = vdwg.mxu0
    %511 = vst [vmem:[#allocation8] sm:$0xff] %v508
    // Predicated region
    $region18: #{tpu_custom_call.1} parent=1 // pred_check
      _
    $region19: #{tpu_custom_call.1} parent=1 // pred_check_branch
      %513 = sbr.rel (0) target = $region21
    $region20: #{tpu_custom_call.1} parent=1 // pred_region
      %s515 = ssub.s32 128, 128
      %516 = vsyncadd [#allocation4], %s515
      %s518 = sshll.u32 [#allocation7], 4
      %s519 = int_to_ptr.vmem [resolvable:$true] %s518
      %521 = dma.vmem_to_hbm [thread:$0]  %s519, 128, %s2, [#allocation4]
    $region21: #{tpu_custom_call.1} parent=1 // pred_fallthru
      _
    // Predicated region
    $region22: #{tpu_custom_call.1} parent=1 // pred_check
      _
    $region23: #{tpu_custom_call.1} parent=1 // pred_check_branch
      %523 = sbr.rel (0) target = $region25
    $region24: #{tpu_custom_call.1} parent=1 // pred_region
      %s525 = ssub.s32 128, 128
      %526 = vsyncadd [#allocation9], %s525
      %s528 = sshll.u32 [#allocation8], 4
      %s529 = int_to_ptr.vmem [resolvable:$true] %s528
      %531 = dma.vmem_to_hbm [thread:$0]  %s529, 128, %s3, [#allocation9]
    $region25: #{tpu_custom_call.1} parent=1 // pred_fallthru
      _
    // Predicated region
    $region26: #{tpu_custom_call.1} parent=1 // pred_check
      _
    $region27: #{tpu_custom_call.1} parent=1 // pred_check_branch
      %533 = sbr.rel (0) target = $region29
    $region28: #{tpu_custom_call.1} parent=1 // pred_region
      %534 = dma.done [#allocation4], 128
    $region29: #{tpu_custom_call.1} parent=1 // pred_fallthru
      _
    // Predicated region
    $region30: #{tpu_custom_call.1} parent=1 // pred_check
      _
    $region31: #{tpu_custom_call.1} parent=1 // pred_check_branch
      %536 = sbr.rel (0) target = $region33
    $region32: #{tpu_custom_call.1} parent=1 // pred_region
      %537 = dma.done [#allocation9], 128
    $region33: #{tpu_custom_call.1} parent=1 // pred_fallthru
      _
    %538 = vsyncpa [#allocation3], 1
    %539 = vsyncpa [#allocation6], 1
    %540 = vsyncpa [#allocation4], 1
    %541 = vsyncpa [#allocation9], 1

</llo_original>
